<compile_context>
chip_gen: v6e
topology: v6e:2x2x1
jax: 0.10.0
libtpu: 0.0.40
codegen_flags: <defaults>
</compile_context>

<pallas_src>
import jax
import jax.numpy as jnp
from jax.experimental import pallas as pl
from jax.experimental.pallas import tpu as pltpu

LANE = 128     # TPU lane width: hidden features padded to a multiple of this
SUBLANE = 8    # f32 sublane multiple for the batch (second-to-last) axis


def _round_up(n, m):
    return ((n + m - 1) // m) * m


def _make_pinn_kernel(num_tanh_layers, input_size, compute_dtype):
    """Kernel for: [Linear + Tanh] * num_tanh_layers, then Linear(hidden, 1)."""

    def kernel(*refs):
        # refs = (x, W0, b0, W1, b1, ..., w_last_row, b_last, out)
        x_ref = refs[0]
        out_ref = refs[-1]
        wb = refs[1:-1]

        # --- First layer: (TB, input_size) @ (input_size, H_pad) with tiny K.
        # Done as VPU broadcast multiply-adds so x never needs lane padding.
        x = x_ref[...]
        w0 = wb[0][...].astype(jnp.float32)
        b0 = wb[1][...].astype(jnp.float32)
        z = x[:, 0:1].astype(jnp.float32) * w0[0:1, :]
        for k in range(1, input_size):
            z = z + x[:, k:k + 1].astype(jnp.float32) * w0[k:k + 1, :]
        h = jnp.tanh(z + b0).astype(compute_dtype)

        # --- Remaining hidden layers: MXU matmul (f32 accumulate) + bias + tanh.
        for layer in range(1, num_tanh_layers):
            w_ref = wb[2 * layer]
            b_ref = wb[2 * layer + 1]
            z = (
                jnp.dot(h, w_ref[...], preferred_element_type=jnp.float32)
                + b_ref[...].astype(jnp.float32)
            )
            h = jnp.tanh(z).astype(compute_dtype)

        # --- Final Linear(hidden, 1): elementwise * weight row, lane-reduce.
        # Writes only (TB, 1) back to HBM instead of a padded (TB, 128) tile.
        wl = wb[-2][...].astype(jnp.float32)   # (1, H_pad)
        bl = wb[-1][...].astype(jnp.float32)   # (1, 1)
        out_ref[...] = (
            jnp.sum(h.astype(jnp.float32) * wl, axis=-1, keepdims=True) + bl
        )

    return kernel


def prepare_pinn_params(params, compute_dtype=jnp.float32):
    """One-time padding / layout prep (hoisted out of the per-call hot path).

    params: list of (W, b) with W in (in_features, out_features) layout
            (transpose of PyTorch nn.Linear) and b shaped (out_features,).
    """
    num_tanh_layers = len(params) - 1
    input_size = params[0][0].shape[0]
    hidden = params[0][0].shape[1]
    h_pad = _round_up(hidden, LANE)

    flat = []
    for idx in range(num_tanh_layers):
        w, b = params[idx]
        in_dim, out_dim = w.shape
        rows = input_size if idx == 0 else h_pad
        w_p = jnp.pad(w.astype(jnp.float32),
                      ((0, rows - in_dim), (0, h_pad - out_dim)))
        b_p = jnp.pad(b.astype(jnp.float32)[None, :],
                      ((0, 0), (0, h_pad - out_dim)))
        flat.extend([w_p.astype(compute_dtype), b_p])

    w_last, b_last = params[-1]            # (hidden, 1), (1,)
    wl = jnp.pad(w_last.astype(jnp.float32).T,
                 ((0, 0), (0, h_pad - w_last.shape[0])))   # (1, h_pad)
    bl = b_last.astype(jnp.float32).reshape(1, 1)
    flat.extend([wl, bl])

    return {
        "flat": flat,
        "num_tanh_layers": num_tanh_layers,
        "input_size": input_size,
        "compute_dtype": compute_dtype,
    }


def pinn_forward(x, prepared, *, tb=512):
    """Runs the PINN forward pass through a single batch-tiled Pallas kernel.

    x: (batch, input_size) float32
    Returns: (batch, 1) float32
    """
    flat = prepared["flat"]
    num_tanh_layers = prepared["num_tanh_layers"]
    input_size = prepared["input_size"]
    compute_dtype = prepared["compute_dtype"]
    assert x.shape[1] == input_size

    batch = x.shape[0]
    tb = min(tb, _round_up(batch, SUBLANE))
    batch_p = _round_up(batch, tb)
    x_p = x.astype(jnp.float32)
    if batch_p != batch:
        x_p = jnp.pad(x_p, ((0, batch_p - batch), (0, 0)))

    grid = (batch_p // tb,)
    in_specs = [pl.BlockSpec((tb, input_size), lambda i: (i, 0))]
    for arr in flat:  # weights/biases: constant index_map -> VMEM-resident across steps
        in_specs.append(pl.BlockSpec(arr.shape, lambda i: (0, 0)))
    out_spec = pl.BlockSpec((tb, 1), lambda i: (i, 0))

    kernel = _make_pinn_kernel(num_tanh_layers, input_size, compute_dtype)
    out = pl.pallas_call(
        kernel,
        grid=grid,
        in_specs=in_specs,
        out_specs=out_spec,
        out_shape=jax.ShapeDtypeStruct((batch_p, 1), jnp.float32),
        compiler_params=pltpu.CompilerParams(
            dimension_semantics=("parallel",),  # shards batch tiles across TCs on v7x
        ),
    )(x_p, *flat)
    return out[:batch]


def init_pinn_params(key, input_size, hidden_size, num_layers):
    """Deterministic init mirroring nn.Linear default (uniform +/- 1/sqrt(fan_in)).

    Returns weights in (in_features, out_features) layout.
    """
    dims = [input_size] + [hidden_size] * num_layers + [1]
    params = []
    for i in range(len(dims) - 1):
        fan_in, fan_out = dims[i], dims[i + 1]
        key, kw, kb = jax.random.split(key, 3)
        bound = 1.0 / jnp.sqrt(jnp.float32(fan_in))
        w = jax.random.uniform(kw, (fan_in, fan_out), jnp.float32, -bound, bound)
        b = jax.random.uniform(kb, (fan_out,), jnp.float32, -bound, bound)
        params.append((w, b))
    return params


def pinn_reference(x, params):
    """Pure-JAX reference for correctness checking."""
    h = x
    for (w, b) in params[:-1]:
        h = jnp.tanh(h @ w + b)
    w, b = params[-1]
    return h @ w + b


if __name__ == "__main__":
    input_size = 2    # e.g. (x, t) collocation points for a PDE
    hidden_size = 32
    num_layers = 3
    batch = 8

    key = jax.random.PRNGKey(0)
    key, kx = jax.random.split(key)
    x = jax.random.uniform(kx, (batch, input_size), jnp.float32, -1.0, 1.0)
    params = init_pinn_params(key, input_size, hidden_size, num_layers)
    ref = pinn_reference(x, params)

    # f32 path (works on all generations; tight tolerance).
    prepared_f32 = prepare_pinn_params(params, compute_dtype=jnp.float32)
    out = jax.block_until_ready(pinn_forward(x, prepared_f32))
    assert out.shape == (batch, 1), out.shape
    assert jnp.max(jnp.abs(out - ref)) < 5e-4, "f32 mismatch vs reference"

    # Multi-tile grid + batch-remainder padding path.
    key, kx2 = jax.random.split(key)
    x_big = jax.random.uniform(kx2, (300, input_size), jnp.float32, -1.0, 1.0)
    out_big = jax.block_until_ready(pinn_forward(x_big, prepared_f32, tb=128))
    ref_big = pinn_reference(x_big, params)
    assert out_big.shape == (300, 1), out_big.shape
    assert jnp.max(jnp.abs(out_big - ref_big)) < 5e-4, "tiled mismatch vs reference"

    # bf16 operand path (v6e/v7x fast path; f32 accumulate; correct-but-upcast on v5e).
    prepared_bf16 = prepare_pinn_params(params, compute_dtype=jnp.bfloat16)
    out_bf16 = jax.block_until_ready(pinn_forward(x, prepared_bf16))
    assert jnp.max(jnp.abs(out_bf16 - ref)) < 5e-2, "bf16 mismatch vs reference"

    print("KERNEL_OK")
</pallas_src>

<mosaic_0001>
module attributes {stable_mosaic.version = 11 : i64} {
  func.func @kernel(%arg0: i32, %arg1: memref<8x2xf32, #tpu.memory_space<vmem>>, %arg2: memref<2x128xf32, #tpu.memory_space<vmem>>, %arg3: memref<1x128xf32, #tpu.memory_space<vmem>>, %arg4: memref<128x128xf32, #tpu.memory_space<vmem>>, %arg5: memref<1x128xf32, #tpu.memory_space<vmem>>, %arg6: memref<128x128xf32, #tpu.memory_space<vmem>>, %arg7: memref<1x128xf32, #tpu.memory_space<vmem>>, %arg8: memref<1x128xf32, #tpu.memory_space<vmem>>, %arg9: memref<1x1xf32, #tpu.memory_space<vmem>>, %arg10: memref<8x1xf32, #tpu.memory_space<vmem>>) attributes {dimension_semantics = [#tpu.dimension_semantics<parallel>], iteration_bounds = array<i64: 1>, scalar_prefetch = 0 : i64, scratch_operands = 0 : i64, tpu.core_type = #tpu.core_type<tc>, window_params = [{transform_indices = @transform_0, window_bounds = array<i64: 8, 2>}, {pipeline_mode = #tpu.pipeline_mode<synchronous>, transform_indices = @transform_1, window_bounds = array<i64: 2, 128>}, {pipeline_mode = #tpu.pipeline_mode<synchronous>, transform_indices = @transform_2, window_bounds = array<i64: 1, 128>}, {pipeline_mode = #tpu.pipeline_mode<synchronous>, transform_indices = @transform_3, window_bounds = array<i64: 128, 128>}, {pipeline_mode = #tpu.pipeline_mode<synchronous>, transform_indices = @transform_4, window_bounds = array<i64: 1, 128>}, {pipeline_mode = #tpu.pipeline_mode<synchronous>, transform_indices = @transform_5, window_bounds = array<i64: 128, 128>}, {pipeline_mode = #tpu.pipeline_mode<synchronous>, transform_indices = @transform_6, window_bounds = array<i64: 1, 128>}, {pipeline_mode = #tpu.pipeline_mode<synchronous>, transform_indices = @transform_7, window_bounds = array<i64: 1, 128>}, {pipeline_mode = #tpu.pipeline_mode<synchronous>, transform_indices = @transform_8, window_bounds = array<i64: 1, 1>}, {transform_indices = @transform_9, window_bounds = array<i64: 8, 1>}]} {
    %c0 = arith.constant 0 : index
    %c0_0 = arith.constant 0 : index
    %0 = vector.load %arg1[%c0, %c0_0] : memref<8x2xf32, #tpu.memory_space<vmem>>, vector<8x2xf32>
    %c0_1 = arith.constant 0 : index
    %c0_2 = arith.constant 0 : index
    %1 = vector.load %arg2[%c0_1, %c0_2] : memref<2x128xf32, #tpu.memory_space<vmem>>, vector<2x128xf32>
    %c0_3 = arith.constant 0 : index
    %c0_4 = arith.constant 0 : index
    %2 = vector.load %arg3[%c0_3, %c0_4] : memref<1x128xf32, #tpu.memory_space<vmem>>, vector<1x128xf32>
    %3 = vector.extract_strided_slice %0 {offsets = [0, 0], sizes = [8, 1], strides = [1, 1]} : vector<8x2xf32> to vector<8x1xf32>
    %4 = vector.extract_strided_slice %1 {offsets = [0, 0], sizes = [1, 128], strides = [1, 1]} : vector<2x128xf32> to vector<1x128xf32>
    %5 = vector.broadcast %3 : vector<8x1xf32> to vector<8x128xf32>
    %6 = vector.broadcast %4 : vector<1x128xf32> to vector<8x128xf32>
    %7 = arith.mulf %5, %6 : vector<8x128xf32>
    %8 = vector.extract_strided_slice %0 {offsets = [0, 1], sizes = [8, 1], strides = [1, 1]} : vector<8x2xf32> to vector<8x1xf32>
    %9 = vector.extract_strided_slice %1 {offsets = [1, 0], sizes = [1, 128], strides = [1, 1]} : vector<2x128xf32> to vector<1x128xf32>
    %10 = vector.broadcast %8 : vector<8x1xf32> to vector<8x128xf32>
    %11 = vector.broadcast %9 : vector<1x128xf32> to vector<8x128xf32>
    %12 = arith.mulf %10, %11 : vector<8x128xf32>
    %13 = arith.addf %7, %12 : vector<8x128xf32>
    %14 = vector.broadcast %2 : vector<1x128xf32> to vector<8x128xf32>
    %15 = arith.addf %13, %14 : vector<8x128xf32>
    %16 = math.tanh %15 : vector<8x128xf32>
    %c0_5 = arith.constant 0 : index
    %c0_6 = arith.constant 0 : index
    %17 = vector.load %arg4[%c0_5, %c0_6] : memref<128x128xf32, #tpu.memory_space<vmem>>, vector<128x128xf32>
    %cst = arith.constant dense<0.000000e+00> : vector<8x128xf32>
    %18 = tpu.matmul %16, %17, %cst {dimension_numbers = #tpu.dot_dimension_numbers<[1], [0], [0], [1], [0, 0, 1, 1], [], []>} : vector<8x128xf32>, vector<128x128xf32>, vector<8x128xf32> -> vector<8x128xf32>
    %c0_7 = arith.constant 0 : index
    %c0_8 = arith.constant 0 : index
    %19 = vector.load %arg5[%c0_7, %c0_8] : memref<1x128xf32, #tpu.memory_space<vmem>>, vector<1x128xf32>
    %20 = vector.broadcast %19 : vector<1x128xf32> to vector<8x128xf32>
    %21 = arith.addf %18, %20 : vector<8x128xf32>
    %22 = math.tanh %21 : vector<8x128xf32>
    %c0_9 = arith.constant 0 : index
    %c0_10 = arith.constant 0 : index
    %23 = vector.load %arg6[%c0_9, %c0_10] : memref<128x128xf32, #tpu.memory_space<vmem>>, vector<128x128xf32>
    %cst_11 = arith.constant dense<0.000000e+00> : vector<8x128xf32>
    %24 = tpu.matmul %22, %23, %cst_11 {dimension_numbers = #tpu.dot_dimension_numbers<[1], [0], [0], [1], [0, 0, 1, 1], [], []>} : vector<8x128xf32>, vector<128x128xf32>, vector<8x128xf32> -> vector<8x128xf32>
    %c0_12 = arith.constant 0 : index
    %c0_13 = arith.constant 0 : index
    %25 = vector.load %arg7[%c0_12, %c0_13] : memref<1x128xf32, #tpu.memory_space<vmem>>, vector<1x128xf32>
    %26 = vector.broadcast %25 : vector<1x128xf32> to vector<8x128xf32>
    %27 = arith.addf %24, %26 : vector<8x128xf32>
    %28 = math.tanh %27 : vector<8x128xf32>
    %c0_14 = arith.constant 0 : index
    %c0_15 = arith.constant 0 : index
    %29 = vector.load %arg8[%c0_14, %c0_15] : memref<1x128xf32, #tpu.memory_space<vmem>>, vector<1x128xf32>
    %c0_16 = arith.constant 0 : index
    %c0_17 = arith.constant 0 : index
    %30 = vector.load %arg9[%c0_16, %c0_17] : memref<1x1xf32, #tpu.memory_space<vmem>>, vector<1x1xf32>
    %31 = vector.broadcast %29 : vector<1x128xf32> to vector<8x128xf32>
    %32 = arith.mulf %28, %31 : vector<8x128xf32>
    %cst_18 = arith.constant dense<0.000000e+00> : vector<8xf32>
    %33 = vector.multi_reduction <add>, %32, %cst_18 [1] : vector<8x128xf32> to vector<8xf32>
    %34 = vector.shape_cast %33 : vector<8xf32> to vector<8x1xf32>
    %35 = vector.broadcast %30 : vector<1x1xf32> to vector<8x1xf32>
    %36 = arith.addf %34, %35 : vector<8x1xf32>
    %c0_19 = arith.constant 0 : index
    %c0_20 = arith.constant 0 : index
    %37 = vector.load %arg10[%c0_19, %c0_20] : memref<8x1xf32, #tpu.memory_space<vmem>>, vector<8x1xf32>
    tpu.vector_store %arg10[%c0_19, %c0_20], %36 {strides = array<i32>} : memref<8x1xf32, #tpu.memory_space<vmem>>, vector<8x1xf32>,
    return
  }
  func.func @transform_0(%arg0: i32) -> (i32, i32) {
    %c0_i32 = arith.constant 0 : i32
    %c0_i32_0 = arith.constant 0 : i32
    return %arg0, %c0_i32 : i32, i32
  }
  func.func @transform_1(%arg0: i32) -> (i32, i32) {
    %c0_i32 = arith.constant 0 : i32
    %c0_i32_0 = arith.constant 0 : i32
    %c0_i32_1 = arith.constant 0 : i32
    return %c0_i32, %c0_i32_0 : i32, i32
  }
  func.func @transform_2(%arg0: i32) -> (i32, i32) {
    %c0_i32 = arith.constant 0 : i32
    %c0_i32_0 = arith.constant 0 : i32
    %c0_i32_1 = arith.constant 0 : i32
    return %c0_i32, %c0_i32_0 : i32, i32
  }
  func.func @transform_3(%arg0: i32) -> (i32, i32) {
    %c0_i32 = arith.constant 0 : i32
    %c0_i32_0 = arith.constant 0 : i32
    %c0_i32_1 = arith.constant 0 : i32
    return %c0_i32, %c0_i32_0 : i32, i32
  }
  func.func @transform_4(%arg0: i32) -> (i32, i32) {
    %c0_i32 = arith.constant 0 : i32
    %c0_i32_0 = arith.constant 0 : i32
    %c0_i32_1 = arith.constant 0 : i32
    return %c0_i32, %c0_i32_0 : i32, i32
  }
  func.func @transform_5(%arg0: i32) -> (i32, i32) {
    %c0_i32 = arith.constant 0 : i32
    %c0_i32_0 = arith.constant 0 : i32
    %c0_i32_1 = arith.constant 0 : i32
    return %c0_i32, %c0_i32_0 : i32, i32
  }
  func.func @transform_6(%arg0: i32) -> (i32, i32) {
    %c0_i32 = arith.constant 0 : i32
    %c0_i32_0 = arith.constant 0 : i32
    %c0_i32_1 = arith.constant 0 : i32
    return %c0_i32, %c0_i32_0 : i32, i32
  }
  func.func @transform_7(%arg0: i32) -> (i32, i32) {
    %c0_i32 = arith.constant 0 : i32
    %c0_i32_0 = arith.constant 0 : i32
    %c0_i32_1 = arith.constant 0 : i32
    return %c0_i32, %c0_i32_0 : i32, i32
  }
  func.func @transform_8(%arg0: i32) -> (i32, i32) {
    %c0_i32 = arith.constant 0 : i32
    %c0_i32_0 = arith.constant 0 : i32
    %c0_i32_1 = arith.constant 0 : i32
    return %c0_i32, %c0_i32_0 : i32, i32
  }
  func.func @transform_9(%arg0: i32) -> (i32, i32) {
    %c0_i32 = arith.constant 0 : i32
    %c0_i32_0 = arith.constant 0 : i32
    return %arg0, %c0_i32 : i32, i32
  }
}

</mosaic_0001>

<llo_original>
// kernel: tpu_custom_call.1
$region0: #{tpu_custom_call.1}
  #allocation0 [shape = 'u32[]', space=smem, size = 0x4, offset = 0x4, fixed_abs, tag = 'smem constant byte address 0x4 - core index']
  #allocation1 [shape = 'u32[144,128]{1,0:T(1,128)}', space=vmem, size = 0x12000, scoped, tag = 'internal scratch']
  #allocation2 [shape = 'f32[1,1]{1,0:T(1,128)S(1)}', space=vmem, size = 0x200, scoped, tag = 'scoped memory for tpu_custom_call.1']
  %s0 = inlined_call_operand.vmem [shape: f32[8,2], index: 0, kind: input, shape index: {}]
  %s1 = inlined_call_operand.vmem [shape: f32[2,128], index: 1, kind: input, shape index: {}]
  %s2 = inlined_call_operand.vmem [shape: f32[1,128], index: 2, kind: input, shape index: {}]
  %s3 = inlined_call_operand.hbm [shape: f32[128,128], index: 3, kind: input, shape index: {}]
  %s4 = inlined_call_operand.vmem [shape: f32[1,128], index: 4, kind: input, shape index: {}]
  %s5 = inlined_call_operand.hbm [shape: f32[128,128], index: 5, kind: input, shape index: {}]
  %s6 = inlined_call_operand.vmem [shape: f32[1,128], index: 6, kind: input, shape index: {}]
  %s7 = inlined_call_operand.vmem [shape: f32[1,128], index: 7, kind: input, shape index: {}]
  %s8 = inlined_call_operand.<no memory space> [shape: f32[1,1], index: 8, kind: input, shape index: {}]
  %s9 = inlined_call_operand.vmem [shape: f32[8,1], index: 9, kind: output, shape index: {}]
  %s10 = sld [smem:[#allocation0]]
  $region54: #{tpu_custom_call.1} parent=0
    _
  %s12 = ssub.s32 1, %s10
  %s13 = scalar_select 0, %s12, %s10
  %v14 = vstv %s8
  %15 = vst [vmem:[#allocation2] sm:$0x1] %v14
  $region1: #{tpu_custom_call.1} parent=0
    #allocation3 [shape = 'u8[65536]{0}', space=vmem, size = 0x10000, scoped, tag = 'input window, operand 3, single buffered']
    #allocation4 [shape = 's32[1]{0}', space=sflag, size = 0x4, scoped, tag = 'scoped memory for tpu_custom_call.1']
    #allocation5 [shape = 'u8[65536]{0}', space=vmem, size = 0x10000, scoped, tag = 'input window, operand 5, single buffered']
    #allocation6 [shape = 's32[1]{0}', space=sflag, size = 0x4, scoped, tag = 'scoped memory for tpu_custom_call.1']
    %16 = vsyncpa [#allocation4], 0
    %17 = vsyncpa [#allocation6], 0
    // Predicated region
    $region2: #{tpu_custom_call.1} parent=1 // pred_check
      _
    $region3: #{tpu_custom_call.1} parent=1 // pred_check_branch
      %19 = sbr.rel (0) target = $region5
    $region4: #{tpu_custom_call.1} parent=1 // pred_region
      _
    $region5: #{tpu_custom_call.1} parent=1 // pred_fallthru
      _
    // Predicated region
    $region6: #{tpu_custom_call.1} parent=1 // pred_check
      _
    $region7: #{tpu_custom_call.1} parent=1 // pred_check_branch
      %21 = sbr.rel (0) target = $region9
    $region8: #{tpu_custom_call.1} parent=1 // pred_region
      _
    $region9: #{tpu_custom_call.1} parent=1 // pred_fallthru
      _
    // Predicated region
    $region10: #{tpu_custom_call.1} parent=1 // pred_check
      _
    $region11: #{tpu_custom_call.1} parent=1 // pred_check_branch
      %23 = sbr.rel (0) target = $region13
    $region12: #{tpu_custom_call.1} parent=1 // pred_region
      _
    $region13: #{tpu_custom_call.1} parent=1 // pred_fallthru
      _
    // Predicated region
    $region14: #{tpu_custom_call.1} parent=1 // pred_check
      _
    $region15: #{tpu_custom_call.1} parent=1 // pred_check_branch
      %25 = sbr.rel (0) target = $region17
    $region16: #{tpu_custom_call.1} parent=1 // pred_region
      %s27 = ssub.s32 2048, 2048
      %28 = vsyncadd [#allocation4], %s27
      %s29 = sshll.u32 [#allocation3], 4
      %s30 = int_to_ptr.vmem [resolvable:$true] %s29
      %35 = dma.hbm_to_vmem [thread:$0]  %s3, 2048, %s30, [#allocation4], 128, 128, 8
    $region17: #{tpu_custom_call.1} parent=1 // pred_fallthru
      _
    // Predicated region
    $region18: #{tpu_custom_call.1} parent=1 // pred_check
      _
    $region19: #{tpu_custom_call.1} parent=1 // pred_check_branch
      %37 = sbr.rel (0) target = $region21
    $region20: #{tpu_custom_call.1} parent=1 // pred_region
      _
    $region21: #{tpu_custom_call.1} parent=1 // pred_fallthru
      _
    // Predicated region
    $region22: #{tpu_custom_call.1} parent=1 // pred_check
      _
    $region23: #{tpu_custom_call.1} parent=1 // pred_check_branch
      %39 = sbr.rel (0) target = $region25
    $region24: #{tpu_custom_call.1} parent=1 // pred_region
      %s41 = ssub.s32 2048, 2048
      %42 = vsyncadd [#allocation6], %s41
      %s43 = sshll.u32 [#allocation5], 4
      %s44 = int_to_ptr.vmem [resolvable:$true] %s43
      %49 = dma.hbm_to_vmem [thread:$0]  %s5, 2048, %s44, [#allocation6], 128, 128, 8
    $region25: #{tpu_custom_call.1} parent=1 // pred_fallthru
      _
    // Predicated region
    $region26: #{tpu_custom_call.1} parent=1 // pred_check
      _
    $region27: #{tpu_custom_call.1} parent=1 // pred_check_branch
      %51 = sbr.rel (0) target = $region29
    $region28: #{tpu_custom_call.1} parent=1 // pred_region
      _
    $region29: #{tpu_custom_call.1} parent=1 // pred_fallthru
      _
    // Predicated region
    $region30: #{tpu_custom_call.1} parent=1 // pred_check
      _
    $region31: #{tpu_custom_call.1} parent=1 // pred_check_branch
      %53 = sbr.rel (0) target = $region33
    $region32: #{tpu_custom_call.1} parent=1 // pred_region
      _
    $region33: #{tpu_custom_call.1} parent=1 // pred_fallthru
      _
    // Predicated region
    $region34: #{tpu_custom_call.1} parent=1 // pred_check
      _
    $region35: #{tpu_custom_call.1} parent=1 // pred_check_branch
      %55 = sbr.rel (0) target = $region37
    $region36: #{tpu_custom_call.1} parent=1 // pred_region
      _
    $region37: #{tpu_custom_call.1} parent=1 // pred_fallthru
      _
    // Predicated region
    $region38: #{tpu_custom_call.1} parent=1 // pred_check
      _
    $region39: #{tpu_custom_call.1} parent=1 // pred_check_branch
      %57 = sbr.rel (0) target = $region41
    $region40: #{tpu_custom_call.1} parent=1 // pred_region
      %58 = dma.done [#allocation4], 2048
    $region41: #{tpu_custom_call.1} parent=1 // pred_fallthru
      _
    // Predicated region
    $region42: #{tpu_custom_call.1} parent=1 // pred_check
      _
    $region43: #{tpu_custom_call.1} parent=1 // pred_check_branch
      %60 = sbr.rel (0) target = $region45
    $region44: #{tpu_custom_call.1} parent=1 // pred_region
      %61 = dma.done [#allocation6], 2048
    $region45: #{tpu_custom_call.1} parent=1 // pred_fallthru
      _
    %v62 = vld [vmem:[%s0] sm:$0xff]
    %v63 = vld [vmem:[%s1] sm:$0x3]
    %v64 = vld [vmem:[%s2] sm:$0x1]
    %66 = vset.pattern.permute.xlu0 0
    %67 = vperm.xlu0 %66, %v62
    %v68 = vpop.permute.xlu0 %67
    %v70 = vlaneseq
    %v71 = vshrl.u32 %v70, 7
    %v72 = vsub.s32 0, %v71
    %v73 = vrot.slane %v63, %v72
    %v74 = vmul.f32 %v68, %v73
    %75 = vset.pattern.permute.xlu0 1
    %76 = vperm.xlu0 %75, %v62
    %v77 = vpop.permute.xlu0 %76
    %v79 = vlaneseq
    %v80 = vshrl.u32 %v79, 7
    %v81 = vsub.s32 1, %v80
    %v82 = vrot.slane %v63, %v81
    %v83 = vmul.f32 %v77, %v82
    %v84 = vadd.f32 %v74, %v83
    %v86 = vlaneseq
    %v87 = vshrl.u32 %v86, 7
    %v88 = vsub.s32 0, %v87
    %v89 = vrot.slane %v64, %v88
    %v91 = vadd.f32 %v84, %v89
    %v92 = vtanh.pop %v91
    %v93 = vld [vmem:[#allocation3] sm:$0xff]
    %v94 = vld [vmem:[#allocation3 + $0x8] sm:$0xff]
    %v95 = vld [vmem:[#allocation3 + $0x10] sm:$0xff]
    %v96 = vld [vmem:[#allocation3 + $0x18] sm:$0xff]
    %v97 = vld [vmem:[#allocation3 + $0x20] sm:$0xff]
    %v98 = vld [vmem:[#allocation3 + $0x28] sm:$0xff]
    %v99 = vld [vmem:[#allocation3 + $0x30] sm:$0xff]
    %v100 = vld [vmem:[#allocation3 + $0x38] sm:$0xff]
    %v101 = vld [vmem:[#allocation3 + $0x40] sm:$0xff]
    %v102 = vld [vmem:[#allocation3 + $0x48] sm:$0xff]
    %v103 = vld [vmem:[#allocation3 + $0x50] sm:$0xff]
    %v104 = vld [vmem:[#allocation3 + $0x58] sm:$0xff]
    %v105 = vld [vmem:[#allocation3 + $0x60] sm:$0xff]
    %v106 = vld [vmem:[#allocation3 + $0x68] sm:$0xff]
    %v107 = vld [vmem:[#allocation3 + $0x70] sm:$0xff]
    %v108 = vld [vmem:[#allocation3 + $0x78] sm:$0xff]
    %v109 = vld [vmem:[%s4] sm:$0x1]
    %v111 = vlaneseq
    %v112 = vshrl.u32 %v111, 7
    %v113 = vsub.s32 0, %v112
    %v114 = vrot.slane %v109, %v113
    %116 = vmatprep.subr.mxu0 0.0
    %117 = vmatpush1.msra.mxu0 %v108
    %118 = vmatprep.subr.mxu0 0.0
    %119 = vmatpush1.msra.mxu0 %v107
    %120 = vmatprep.subr.mxu0 0.0
    %121 = vmatpush1.msra.mxu0 %v106
    %122 = vmatprep.subr.mxu0 0.0
    %123 = vmatpush1.msra.mxu0 %v105
    %124 = vmatprep.subr.mxu0 0.0
    %125 = vmatpush1.msra.mxu0 %v104
    %126 = vmatprep.subr.mxu0 0.0
    %127 = vmatpush1.msra.mxu0 %v103
    %128 = vmatprep.subr.mxu0 0.0
    %129 = vmatpush1.msra.mxu0 %v102
    %130 = vmatprep.subr.mxu0 0.0
    %131 = vmatpush1.msra.mxu0 %v101
    %132 = vmatprep.subr.mxu0 0.0
    %133 = vmatpush1.msra.mxu0 %v100
    %134 = vmatprep.subr.mxu0 0.0
    %135 = vmatpush1.msra.mxu0 %v99
    %136 = vmatprep.subr.mxu0 0.0
    %137 = vmatpush1.msra.mxu0 %v98
    %138 = vmatprep.subr.mxu0 0.0
    %139 = vmatpush1.msra.mxu0 %v97
    %140 = vmatprep.subr.mxu0 0.0
    %141 = vmatpush1.msra.mxu0 %v96
    %142 = vmatprep.subr.mxu0 0.0
    %143 = vmatpush1.msra.mxu0 %v95
    %144 = vmatprep.subr.mxu0 0.0
    %145 = vmatpush1.msra.mxu0 %v94
    %146 = vmatprep.subr.mxu0 0.0
    %147 = vmatpush1.msra.mxu0 %v93
    %148 = vmatprep.subr.mxu0 0.0
    %149 = vmatpush2.msra.mxu0 0.0
    %150 = vmatprep.subr.mxu0 0.0
    %151 = vmatpush2.msra.mxu0 0.0
    %152 = vmatprep.subr.mxu0 0.0
    %153 = vmatpush2.msra.mxu0 0.0
    %154 = vmatprep.subr.mxu0 0.0
    %155 = vmatpush2.msra.mxu0 0.0
    %156 = vmatprep.subr.mxu0 0.0
    %157 = vmatpush2.msra.mxu0 0.0
    %158 = vmatprep.subr.mxu0 0.0
    %159 = vmatpush2.msra.mxu0 0.0
    %160 = vmatprep.subr.mxu0 0.0
    %161 = vmatpush2.msra.mxu0 0.0
    %162 = vmatprep.subr.mxu0 0.0
    %163 = vmatpush2.msra.mxu0 0.0
    %164 = vmatprep.subr.mxu0 0.0
    %165 = vmatpush2.msra.mxu0 0.0
    %166 = vmatprep.subr.mxu0 0.0
    %167 = vmatpush2.msra.mxu0 0.0
    %168 = vmatprep.subr.mxu0 0.0
    %169 = vmatpush2.msra.mxu0 0.0
    %170 = vmatprep.subr.mxu0 0.0
    %171 = vmatpush2.msra.mxu0 0.0
    %172 = vmatprep.subr.mxu0 0.0
    %173 = vmatpush2.msra.mxu0 0.0
    %174 = vmatprep.subr.mxu0 0.0
    %175 = vmatpush2.msra.mxu0 0.0
    %176 = vmatprep.subr.mxu0 0.0
    %177 = vmatpush2.msra.mxu0 0.0
    %178 = vmatprep.subr.mxu0 0.0
    %179 = vmatpush2.msra.mxu0 0.0
    %180 = vmatprep.mubr.f32.mxu0 0.0
    %181 = vmatmul.mubr.f32.gmra.mxu0 %v92
    %v182 = vpop.f32.mrf.mxu0
    %v183 = vadd.f32 %v114, %v182
    %v184 = vpop.f32.mrf.mxu0
    %185 = vdwg.mxu0
    %v186 = vtanh.pop %v183
    %v187 = vld [vmem:[#allocation5] sm:$0xff]
    %v188 = vld [vmem:[#allocation5 + $0x8] sm:$0xff]
    %v189 = vld [vmem:[#allocation5 + $0x10] sm:$0xff]
    %v190 = vld [vmem:[#allocation5 + $0x18] sm:$0xff]
    %v191 = vld [vmem:[#allocation5 + $0x20] sm:$0xff]
    %v192 = vld [vmem:[#allocation5 + $0x28] sm:$0xff]
    %v193 = vld [vmem:[#allocation5 + $0x30] sm:$0xff]
    %v194 = vld [vmem:[#allocation5 + $0x38] sm:$0xff]
    %v195 = vld [vmem:[#allocation5 + $0x40] sm:$0xff]
    %v196 = vld [vmem:[#allocation5 + $0x48] sm:$0xff]
    %v197 = vld [vmem:[#allocation5 + $0x50] sm:$0xff]
    %v198 = vld [vmem:[#allocation5 + $0x58] sm:$0xff]
    %v199 = vld [vmem:[#allocation5 + $0x60] sm:$0xff]
    %v200 = vld [vmem:[#allocation5 + $0x68] sm:$0xff]
    %v201 = vld [vmem:[#allocation5 + $0x70] sm:$0xff]
    %v202 = vld [vmem:[#allocation5 + $0x78] sm:$0xff]
    %v203 = vld [vmem:[%s6] sm:$0x1]
    %v205 = vlaneseq
    %v206 = vshrl.u32 %v205, 7
    %v207 = vsub.s32 0, %v206
    %v208 = vrot.slane %v203, %v207
    %210 = vmatprep.subr.mxu0 0.0
    %211 = vmatpush1.msra.mxu0 %v202
    %212 = vmatprep.subr.mxu0 0.0
    %213 = vmatpush1.msra.mxu0 %v201
    %214 = vmatprep.subr.mxu0 0.0
    %215 = vmatpush1.msra.mxu0 %v200
    %216 = vmatprep.subr.mxu0 0.0
    %217 = vmatpush1.msra.mxu0 %v199
    %218 = vmatprep.subr.mxu0 0.0
    %219 = vmatpush1.msra.mxu0 %v198
    %220 = vmatprep.subr.mxu0 0.0
    %221 = vmatpush1.msra.mxu0 %v197
    %222 = vmatprep.subr.mxu0 0.0
    %223 = vmatpush1.msra.mxu0 %v196
    %224 = vmatprep.subr.mxu0 0.0
    %225 = vmatpush1.msra.mxu0 %v195
    %226 = vmatprep.subr.mxu0 0.0
    %227 = vmatpush1.msra.mxu0 %v194
    %228 = vmatprep.subr.mxu0 0.0
    %229 = vmatpush1.msra.mxu0 %v193
    %230 = vmatprep.subr.mxu0 0.0
    %231 = vmatpush1.msra.mxu0 %v192
    %232 = vmatprep.subr.mxu0 0.0
    %233 = vmatpush1.msra.mxu0 %v191
    %234 = vmatprep.subr.mxu0 0.0
    %235 = vmatpush1.msra.mxu0 %v190
    %236 = vmatprep.subr.mxu0 0.0
    %237 = vmatpush1.msra.mxu0 %v189
    %238 = vmatprep.subr.mxu0 0.0
    %239 = vmatpush1.msra.mxu0 %v188
    %240 = vmatprep.subr.mxu0 0.0
    %241 = vmatpush1.msra.mxu0 %v187
    %242 = vmatprep.subr.mxu0 0.0
    %243 = vmatpush2.msra.mxu0 0.0
    %244 = vmatprep.subr.mxu0 0.0
    %245 = vmatpush2.msra.mxu0 0.0
    %246 = vmatprep.subr.mxu0 0.0
    %247 = vmatpush2.msra.mxu0 0.0
    %248 = vmatprep.subr.mxu0 0.0
    %249 = vmatpush2.msra.mxu0 0.0
    %250 = vmatprep.subr.mxu0 0.0
    %251 = vmatpush2.msra.mxu0 0.0
    %252 = vmatprep.subr.mxu0 0.0
    %253 = vmatpush2.msra.mxu0 0.0
    %254 = vmatprep.subr.mxu0 0.0
    %255 = vmatpush2.msra.mxu0 0.0
    %256 = vmatprep.subr.mxu0 0.0
    %257 = vmatpush2.msra.mxu0 0.0
    %258 = vmatprep.subr.mxu0 0.0
    %259 = vmatpush2.msra.mxu0 0.0
    %260 = vmatprep.subr.mxu0 0.0
    %261 = vmatpush2.msra.mxu0 0.0
    %262 = vmatprep.subr.mxu0 0.0
    %263 = vmatpush2.msra.mxu0 0.0
    %264 = vmatprep.subr.mxu0 0.0
    %265 = vmatpush2.msra.mxu0 0.0
    %266 = vmatprep.subr.mxu0 0.0
    %267 = vmatpush2.msra.mxu0 0.0
    %268 = vmatprep.subr.mxu0 0.0
    %269 = vmatpush2.msra.mxu0 0.0
    %270 = vmatprep.subr.mxu0 0.0
    %271 = vmatpush2.msra.mxu0 0.0
    %272 = vmatprep.subr.mxu0 0.0
    %273 = vmatpush2.msra.mxu0 0.0
    %274 = vmatprep.mubr.f32.mxu0 0.0
    %275 = vmatmul.mubr.f32.gmra.mxu0 %v186
    %v276 = vpop.f32.mrf.mxu0
    %v277 = vadd.f32 %v208, %v276
    %v278 = vpop.f32.mrf.mxu0
    %279 = vdwg.mxu0
    %v280 = vtanh.pop %v277
    %v281 = vld [vmem:[%s7] sm:$0x1]
    %v282 = vld [vmem:[#allocation2] sm:$0x1]
    %v284 = vlaneseq
    %v285 = vshrl.u32 %v284, 7
    %v286 = vsub.s32 0, %v285
    %v287 = vrot.slane %v281, %v286
    %v289 = vmul.f32 %v280, %v287
    %290 = vadd.xlane.f32.xlu0 %v289
    %v291 = vpop.xlane.xlu0 %290
    %v293 = vlaneseq
    %v294 = vshrl.u32 %v293, 7
    %v295 = vsub.s32 0, %v294
    %v296 = vrot.slane %v282, %v295
    %v298 = vadd.f32 %v291, %v296
    %vm299 = vcmask 7168
    %300 = vst.msk [vmem:[%s9] sm:$0xff] %vm299, %v298
    // Predicated region
    $region46: #{tpu_custom_call.1} parent=1 // pred_check
      _
    $region47: #{tpu_custom_call.1} parent=1 // pred_check_branch
      %302 = sbr.rel (0) target = $region49
    $region48: #{tpu_custom_call.1} parent=1 // pred_region
      _
    $region49: #{tpu_custom_call.1} parent=1 // pred_fallthru
      _
    // Predicated region
    $region50: #{tpu_custom_call.1} parent=1 // pred_check
      _
    $region51: #{tpu_custom_call.1} parent=1 // pred_check_branch
      %304 = sbr.rel (0) target = $region53
    $region52: #{tpu_custom_call.1} parent=1 // pred_region
      _
    $region53: #{tpu_custom_call.1} parent=1 // pred_fallthru
      _
    %305 = vsyncpa [#allocation4], 1
    %306 = vsyncpa [#allocation6], 1

</llo_original>
